<compile_context>
chip_gen: v5e
topology: v5e:2x2
jax: 0.10.0
libtpu: 0.0.40
codegen_flags: <defaults>
</compile_context>

<pallas_src>
import functools

import jax
import jax.numpy as jnp
from jax import lax
from jax.experimental import pallas as pl
from jax.experimental.pallas import tpu as pltpu

SUBLANE = 8
LANE = 128
TARGET_TILE_ELEMS = 512 * 1024          # ~2 MiB per f32 input tile
VMEM_LIMIT_BYTES = 32 * 1024 * 1024     # within default/physical on v5e/v6e/v7x


# ---------------------------------------------------------------------------
# Kernels
# ---------------------------------------------------------------------------
def _mse_sum_kernel(x_ref, y_ref, out_ref, acc_ref, *, tiles_per_shard,
                    valid_rows, block_rows, needs_mask):
    """Per-shard accumulation of sum((x-y)^2) into a VMEM vector accumulator."""
    i = pl.program_id(1)

    @pl.when(i == 0)
    def _():
        acc_ref[...] = jnp.zeros_like(acc_ref)

    d = x_ref[...].astype(jnp.float32) - y_ref[...].astype(jnp.float32)
    contrib = d * d
    if needs_mask:
        # Logical (unclamped) row-tile index of this step; garbage / duplicated
        # rows beyond the true extent contribute zero.
        t = pl.program_id(0) * tiles_per_shard + i
        row0 = t * block_rows
        row_ids = row0 + lax.broadcasted_iota(jnp.int32, contrib.shape, 0)
        contrib = jnp.where(row_ids < valid_rows, contrib, 0.0)
    acc_ref[...] += contrib

    @pl.when(i == tiles_per_shard - 1)
    def _():
        # Single cross-lane reduce per shard; broadcast into this shard's
        # (8,128) output block (wrapper reads element [0,0] of each block).
        out_ref[...] = jnp.full(out_ref.shape, jnp.sum(acc_ref[...]), jnp.float32)


def _mse_elem_kernel(x_ref, y_ref, o_ref):
    """Per-element squared difference (computed in f32, cast on store)."""
    d = x_ref[...].astype(jnp.float32) - y_ref[...].astype(jnp.float32)
    o_ref[...] = (d * d).astype(o_ref.dtype)


# ---------------------------------------------------------------------------
# Wrapper glue (flatten / slab layout in plain JAX; shapes are static)
# ---------------------------------------------------------------------------
def _choose_slab(n):
    """Pick a lane-dense slab width (multiple of 128) avoiding padding if possible."""
    for lanes in (512, 256, 128):
        if n % lanes == 0:
            return lanes, 0
    lanes = 512
    return lanes, (-n) % lanes


def _to_slab(x, lanes, pad):
    flat = x.reshape(-1)
    if pad:
        # Only taken when no multiple of 128 divides n; zero pad contributes 0.
        flat = jnp.pad(flat, (0, pad))
    return flat.reshape(flat.shape[0] // lanes, lanes)


@functools.partial(jax.jit, static_argnames=("size_average", "reduce"))
def mse_loss(x, y, size_average=True, reduce=True):
    assert x.shape == y.shape, "input and target must have the same shape"
    n = x.size
    itemsize = jnp.dtype(x.dtype).itemsize
    lanes, pad = _choose_slab(n)
    x2d = _to_slab(x, lanes, pad)
    y2d = _to_slab(y, lanes, pad)
    rows = x2d.shape[0]

    # Tile rows: either the full (possibly small) row extent, or a large
    # multiple-of-32 tile (covers 8/16/32 sublane packing for 32/16/8-bit dtypes).
    max_block_rows = TARGET_TILE_ELEMS // lanes
    block_rows = rows if rows <= max_block_rows else max_block_rows
    total_tiles = -(-rows // block_rows)

    if reduce:
        num_shards = 2 if total_tiles >= 2 else 1   # use both TCs on v7x
        tiles_per_shard = -(-total_tiles // num_shards)
        needs_mask = (rows % block_rows != 0) or (
            num_shards * tiles_per_shard != total_tiles)

        def in_map(s, i):
            t = s * tiles_per_shard + i
            return (jnp.minimum(t, total_tiles - 1), 0)   # clamp duplicated tiles

        kernel = functools.partial(
            _mse_sum_kernel,
            tiles_per_shard=tiles_per_shard,
            valid_rows=rows,
            block_rows=block_rows,
            needs_mask=needs_mask,
        )
        partial_blocks = pl.pallas_call(
            kernel,
            out_shape=jax.ShapeDtypeStruct((num_shards * SUBLANE, LANE),
                                           jnp.float32),
            grid_spec=pltpu.PrefetchScalarGridSpec(
                num_scalar_prefetch=0,
                grid=(num_shards, tiles_per_shard),
                in_specs=[
                    pl.BlockSpec((block_rows, lanes), in_map),
                    pl.BlockSpec((block_rows, lanes), in_map),
                ],
                out_specs=pl.BlockSpec((SUBLANE, LANE), lambda s, i: (s, 0)),
                scratch_shapes=[pltpu.VMEM((block_rows, lanes), jnp.float32)],
            ),
            compiler_params=pltpu.CompilerParams(
                dimension_semantics=("parallel", "arbitrary"),
                vmem_limit_bytes=VMEM_LIMIT_BYTES,
            ),
            cost_estimate=pl.CostEstimate(
                flops=3 * n,
                transcendentals=0,
                bytes_accessed=2 * n * itemsize + num_shards * SUBLANE * LANE * 4,
            ),
        )(x2d, y2d)

        total = jnp.sum(partial_blocks[0::SUBLANE, 0])
        if size_average:
            total = total / jnp.float32(n)
        return total.astype(x.dtype)
    else:
        out2d = pl.pallas_call(
            _mse_elem_kernel,
            out_shape=jax.ShapeDtypeStruct(x2d.shape, x.dtype),
            grid_spec=pltpu.PrefetchScalarGridSpec(
                num_scalar_prefetch=0,
                grid=(total_tiles,),
                in_specs=[
                    pl.BlockSpec((block_rows, lanes), lambda i: (i, 0)),
                    pl.BlockSpec((block_rows, lanes), lambda i: (i, 0)),
                ],
                out_specs=pl.BlockSpec((block_rows, lanes), lambda i: (i, 0)),
            ),
            compiler_params=pltpu.CompilerParams(
                dimension_semantics=("parallel",),
                vmem_limit_bytes=VMEM_LIMIT_BYTES,
            ),
            cost_estimate=pl.CostEstimate(
                flops=2 * n,
                transcendentals=0,
                bytes_accessed=3 * n * itemsize,
            ),
        )(x2d, y2d)
        if pad:
            return out2d.reshape(-1)[:n].reshape(x.shape)
        return out2d.reshape(x.shape)


# ---------------------------------------------------------------------------
# Demo / correctness check
# ---------------------------------------------------------------------------
if __name__ == "__main__":
    key = jax.random.PRNGKey(0)
    kx, ky, kx2, ky2 = jax.random.split(key, 4)

    # Small NCHW-like input consistent with the (N, *) contract.
    x = jax.random.normal(kx, (2, 4, 16, 16), dtype=jnp.float32)
    y = jax.random.normal(ky, (2, 4, 16, 16), dtype=jnp.float32)

    out_mean = mse_loss(x, y, size_average=True, reduce=True)
    jax.block_until_ready(out_mean)
    assert jnp.allclose(out_mean, jnp.mean((x - y) ** 2), rtol=1e-5, atol=1e-5)

    out_sum = mse_loss(x, y, size_average=False, reduce=True)
    jax.block_until_ready(out_sum)
    assert jnp.allclose(out_sum, jnp.sum((x - y) ** 2), rtol=1e-5, atol=1e-4)

    out_elem = mse_loss(x, y, reduce=False)
    jax.block_until_ready(out_elem)
    assert out_elem.shape == x.shape
    assert jnp.allclose(out_elem, (x - y) ** 2, rtol=1e-5, atol=1e-6)

    # Medium input exercising the multi-tile / 2-shard / ragged-tail paths.
    xb = jax.random.normal(kx2, (8, 16, 64, 65), dtype=jnp.float32)
    yb = jax.random.normal(ky2, (8, 16, 64, 65), dtype=jnp.float32)

    outb_mean = mse_loss(xb, yb, size_average=True, reduce=True)
    jax.block_until_ready(outb_mean)
    assert jnp.allclose(outb_mean, jnp.mean((xb - yb) ** 2), rtol=1e-4, atol=1e-5)

    outb_sum = mse_loss(xb, yb, size_average=False, reduce=True)
    jax.block_until_ready(outb_sum)
    assert jnp.allclose(outb_sum, jnp.sum((xb - yb) ** 2), rtol=1e-4, atol=1e-2)

    outb_elem = mse_loss(xb, yb, reduce=False)
    jax.block_until_ready(outb_elem)
    assert outb_elem.shape == xb.shape
    assert jnp.allclose(outb_elem, (xb - yb) ** 2, rtol=1e-5, atol=1e-6)

    print("KERNEL_OK")
</pallas_src>

<mosaic_0001>
module attributes {stable_mosaic.version = 11 : i64} {
  func.func @_mse_sum_kernel(%arg0: i32, %arg1: i32, %arg2: memref<4x512xf32, #tpu.memory_space<vmem>>, %arg3: memref<4x512xf32, #tpu.memory_space<vmem>>, %arg4: memref<8x128xf32, #tpu.memory_space<vmem>>, %arg5: memref<4x512xf32, #tpu.memory_space<vmem>>) attributes {dimension_semantics = [#tpu.dimension_semantics<parallel>, #tpu.dimension_semantics<arbitrary>], iteration_bounds = array<i64: 1, 1>, scalar_prefetch = 0 : i64, scratch_operands = 1 : i64, tpu.core_type = #tpu.core_type<tc>, window_params = [{transform_indices = @transform_0, window_bounds = array<i64: 4, 512>}, {transform_indices = @transform_1, window_bounds = array<i64: 4, 512>}, {transform_indices = @transform_2, window_bounds = array<i64: 8, 128>}]} {
    %c0_i32 = arith.constant 0 : i32
    %0 = arith.cmpi eq, %arg1, %c0_i32 : i32
    %1 = arith.extui %0 : i1 to i32
    %c0_i32_0 = arith.constant 0 : i32
    %2 = arith.cmpi ne, %1, %c0_i32_0 : i32
    scf.if %2 {
      %cst = arith.constant 0.000000e+00 : f32
      %13 = vector.broadcast %cst : f32 to vector<4x512xf32>
      %c0_10 = arith.constant 0 : index
      %c0_11 = arith.constant 0 : index
      %14 = vector.load %arg5[%c0_10, %c0_11] : memref<4x512xf32, #tpu.memory_space<vmem>>, vector<4x512xf32>
      tpu.vector_store %arg5[%c0_10, %c0_11], %13 {strides = array<i32>} : memref<4x512xf32, #tpu.memory_space<vmem>>, vector<4x512xf32>,
    } else {
    }
    %c0 = arith.constant 0 : index
    %c0_1 = arith.constant 0 : index
    %3 = vector.load %arg2[%c0, %c0_1] : memref<4x512xf32, #tpu.memory_space<vmem>>, vector<4x512xf32>
    %c0_2 = arith.constant 0 : index
    %c0_3 = arith.constant 0 : index
    %4 = vector.load %arg3[%c0_2, %c0_3] : memref<4x512xf32, #tpu.memory_space<vmem>>, vector<4x512xf32>
    %5 = arith.subf %3, %4 : vector<4x512xf32>
    %6 = arith.mulf %5, %5 : vector<4x512xf32>
    %c0_4 = arith.constant 0 : index
    %c0_5 = arith.constant 0 : index
    %7 = vector.load %arg5[%c0_4, %c0_5] : memref<4x512xf32, #tpu.memory_space<vmem>>, vector<4x512xf32>
    %8 = arith.addf %7, %6 : vector<4x512xf32>
    %c0_6 = arith.constant 0 : index
    %c0_7 = arith.constant 0 : index
    %9 = vector.load %arg5[%c0_6, %c0_7] : memref<4x512xf32, #tpu.memory_space<vmem>>, vector<4x512xf32>
    tpu.vector_store %arg5[%c0_6, %c0_7], %8 {strides = array<i32>} : memref<4x512xf32, #tpu.memory_space<vmem>>, vector<4x512xf32>,
    %c0_i32_8 = arith.constant 0 : i32
    %10 = arith.cmpi eq, %arg1, %c0_i32_8 : i32
    %11 = arith.extui %10 : i1 to i32
    %c0_i32_9 = arith.constant 0 : i32
    %12 = arith.cmpi ne, %11, %c0_i32_9 : i32
    scf.if %12 {
      %c0_10 = arith.constant 0 : index
      %c0_11 = arith.constant 0 : index
      %13 = vector.load %arg5[%c0_10, %c0_11] : memref<4x512xf32, #tpu.memory_space<vmem>>, vector<4x512xf32>
      %14 = vector.shape_cast %13 : vector<4x512xf32> to vector<1x4x512xf32>
      %cst = arith.constant dense<0.000000e+00> : vector<1xf32>
      %15 = vector.multi_reduction <add>, %14, %cst [1, 2] : vector<1x4x512xf32> to vector<1xf32>
      %16 = vector.shape_cast %15 : vector<1xf32> to vector<1x1x1xf32>
      %17 = vector.extract %16[0, 0, 0] : f32 from vector<1x1x1xf32>
      %18 = vector.broadcast %17 : f32 to vector<8x128xf32>
      %c0_12 = arith.constant 0 : index
      %c0_13 = arith.constant 0 : index
      %19 = vector.load %arg4[%c0_12, %c0_13] : memref<8x128xf32, #tpu.memory_space<vmem>>, vector<8x128xf32>
      tpu.vector_store %arg4[%c0_12, %c0_13], %18 {strides = array<i32>} : memref<8x128xf32, #tpu.memory_space<vmem>>, vector<8x128xf32>,
    } else {
    }
    return
  }
  func.func @transform_0(%arg0: i32, %arg1: i32) -> (i32, i32) {
    %c1_i32 = arith.constant 1 : i32
    %0 = arith.muli %arg0, %c1_i32 : i32
    %1 = arith.addi %0, %arg1 : i32
    %c0_i32 = arith.constant 0 : i32
    %2 = arith.minsi %1, %c0_i32 : i32
    %c0_i32_0 = arith.constant 0 : i32
    %c0_i32_1 = arith.constant 0 : i32
    return %2, %c0_i32_0 : i32, i32
  }
  func.func @transform_1(%arg0: i32, %arg1: i32) -> (i32, i32) {
    %c1_i32 = arith.constant 1 : i32
    %0 = arith.muli %arg0, %c1_i32 : i32
    %1 = arith.addi %0, %arg1 : i32
    %c0_i32 = arith.constant 0 : i32
    %2 = arith.minsi %1, %c0_i32 : i32
    %c0_i32_0 = arith.constant 0 : i32
    %c0_i32_1 = arith.constant 0 : i32
    return %2, %c0_i32_0 : i32, i32
  }
  func.func @transform_2(%arg0: i32, %arg1: i32) -> (i32, i32) {
    %c0_i32 = arith.constant 0 : i32
    %c0_i32_0 = arith.constant 0 : i32
    return %arg0, %c0_i32 : i32, i32
  }
}

</mosaic_0001>

<llo_original>
// kernel: mse_loss.1
$region0: #{mse_loss.1}
  #allocation0 [shape = 'u32[]', space=smem, size = 0x4, offset = 0x4, fixed_abs, tag = 'smem constant byte address 0x4 - core index']
  #allocation1 [shape = 'u32[72,128]{1,0:T(1,128)}', space=vmem, size = 0x9000, scoped, tag = 'internal scratch']
  #allocation2 [shape = 'f32[4,512]{1,0:T(4,128)}', space=vmem, size = 0x2000, scoped, tag = 'scratch operand']
  %s0 = inlined_call_operand.vmem [shape: f32[4,512], index: 0, kind: input, shape index: {}]
  %s1 = inlined_call_operand.vmem [shape: f32[4,512], index: 1, kind: input, shape index: {}]
  %s2 = inlined_call_operand.vmem [shape: f32[8,128], index: 2, kind: output, shape index: {}]
  %s3 = sld [smem:[#allocation0]]
  $region26: #{mse_loss.1} parent=0
    _
  %s5 = ssub.s32 1, %s3
  %s6 = scalar_select 0, %s5, %s3
  // Predicated region
  $region2: #{mse_loss.1} parent=0 // pred_check
    _
  $region3: #{mse_loss.1} parent=0 // pred_check_branch
    %8 = sbr.rel (0) target = $region5
  $region4: #{mse_loss.1} parent=0 // pred_region
    %s9 = sadd.s32 0, 0
    %p10 = scmp.lt.s32.totalorder %s9, 0
    %s11 = scalar_select %p10, %s9, 0
    %p12 = scmp.lt.s32.totalorder %s11, 0
    %s13 = scalar_select %p12, %s11, 0
    %s14 = smul.addr %s13, 4
    %s15 = smul.addr %s14, 4
    %s16 = scalar_lea.vmem %s0, %s15
    %s17 = sadd.s32 0, 0
    %p18 = scmp.lt.s32.totalorder %s17, 0
    %s19 = scalar_select %p18, %s17, 0
  $region5: #{mse_loss.1} parent=0 // pred_fallthru
    _
  // Predicated region
  $region6: #{mse_loss.1} parent=0 // pred_check
    _
  $region7: #{mse_loss.1} parent=0 // pred_check_branch
    %21 = sbr.rel (0) target = $region9
  $region8: #{mse_loss.1} parent=0 // pred_region
    %s22 = sadd.s32 0, 0
    %p23 = scmp.lt.s32.totalorder %s22, 0
    %s24 = scalar_select %p23, %s22, 0
    %p25 = scmp.lt.s32.totalorder %s24, 0
    %s26 = scalar_select %p25, %s24, 0
    %s27 = smul.addr %s26, 4
    %s28 = smul.addr %s27, 4
    %s29 = scalar_lea.vmem %s1, %s28
    %s30 = sadd.s32 0, 0
    %p31 = scmp.lt.s32.totalorder %s30, 0
    %s32 = scalar_select %p31, %s30, 0
  $region9: #{mse_loss.1} parent=0 // pred_fallthru
    _
  %s33 = sadd.s32 0, 0
  %p34 = scmp.lt.s32.totalorder %s33, 0
  %s35 = scalar_select %p34, %s33, 0
  %p36 = scmp.lt.s32.totalorder %s35, 0
  %s37 = scalar_select %p36, %s35, 0
  %s38 = smul.addr %s37, 4
  %s39 = smul.addr %s38, 4
  %s40 = scalar_lea.vmem %s0, %s39
  %s41 = sadd.s32 0, 0
  %p42 = scmp.lt.s32.totalorder %s41, 0
  %s43 = scalar_select %p42, %s41, 0
  %p44 = scmp.lt.s32.totalorder %s43, 0
  %s45 = scalar_select %p44, %s43, 0
  %s46 = smul.addr %s45, 4
  %s47 = smul.addr %s46, 4
  %s48 = scalar_lea.vmem %s1, %s47
  %s49 = sadd.s32 0, 0
  %p50 = scmp.lt.s32.totalorder %s49, 0
  %s51 = scalar_select %p50, %s49, 0
  %p52 = scmp.lt.s32.totalorder %s51, 0
  %s53 = scalar_select %p52, %s51, 0
  %s54 = smul.addr %s53, 4
  %s55 = smul.addr %s54, 4
  %s56 = scalar_lea.vmem %s0, %s55
  %s57 = sadd.s32 0, 0
  %p58 = scmp.lt.s32.totalorder %s57, 0
  %s59 = scalar_select %p58, %s57, 0
  %s60 = sadd.s32 0, 0
  %p61 = scmp.lt.s32.totalorder %s60, 0
  %s62 = scalar_select %p61, %s60, 0
  %p63 = scmp.lt.s32.totalorder %s62, 0
  %s64 = scalar_select %p63, %s62, 0
  %s65 = smul.addr %s64, 4
  %s66 = smul.addr %s65, 4
  %s67 = scalar_lea.vmem %s1, %s66
  %s68 = sadd.s32 0, 0
  %p69 = scmp.lt.s32.totalorder %s68, 0
  %s70 = scalar_select %p69, %s68, 0
  %p71 = scmp.eq.s32.totalorder 0, 0
  // Predicated region
  $region10: #{mse_loss.1} parent=0 // pred_check
    %p72 = pneg %p71
  $region11: #{mse_loss.1} parent=0 // pred_check_branch
    %74 = sbr.rel (%p72) target = $region13
  $region12: #{mse_loss.1} parent=0 // pred_region
    %75 = vst [vmem:[#allocation2] sm:$0xff] 0.0
    %76 = vst [vmem:[#allocation2 + $0x8] sm:$0xff] 0.0
  $region13: #{mse_loss.1} parent=0 // pred_fallthru
    _
  %v77 = vld [vmem:[%s56] sm:$0xff]
  %v78 = vld [vmem:[%s56 + $0x8] sm:$0xff]
  %v79 = vld [vmem:[%s67] sm:$0xff]
  %v80 = vld [vmem:[%s67 + $0x8] sm:$0xff]
  %v81 = vsub.f32 %v77, %v79
  %v82 = vsub.f32 %v78, %v80
  %v83 = vmul.f32 %v81, %v81
  %v84 = vmul.f32 %v82, %v82
  %v85 = vld [vmem:[#allocation2] sm:$0xff]
  %v86 = vld [vmem:[#allocation2 + $0x8] sm:$0xff]
  %v87 = vadd.f32 %v85, %v83
  %v88 = vadd.f32 %v86, %v84
  %89 = vst [vmem:[#allocation2] sm:$0xff] %v87
  %90 = vst [vmem:[#allocation2 + $0x8] sm:$0xff] %v88
  // Predicated region
  $region14: #{mse_loss.1} parent=0 // pred_check
    %p91 = pneg %p71
  $region15: #{mse_loss.1} parent=0 // pred_check_branch
    %93 = sbr.rel (%p91) target = $region17
  $region16: #{mse_loss.1} parent=0 // pred_region
    %v94 = vld [vmem:[#allocation2] sm:$0xff]
    %v95 = vld [vmem:[#allocation2 + $0x8] sm:$0xff]
    %98 = vst [vmem:[#allocation1] ss:$2 sm:$0xff] %v94
    %s99 = scalar_lea.vmem [#allocation1], 16
    %100 = vst [vmem:[%s99] ss:$2 sm:$0xff] %v95
    %v101 = vld.sshfl [vmem:[#allocation1] sm:$0xff pattern:$0x75316420]
    %v102 = vld.sshfl [vmem:[#allocation1 + $0x8] sm:$0xff pattern:$0x75316420]
    %v103 = vld.sshfl [vmem:[#allocation1 + $0x10] sm:$0xff pattern:$0x75316420]
    %v104 = vld.sshfl [vmem:[#allocation1 + $0x18] sm:$0xff pattern:$0x75316420]
    %vm109 = vcmask 1043456
    %v110 = vsel %vm109, %v101, 0.0
    %v111 = vsel %vm109, %v102, 0.0
    %v112 = vadd.f32 %v110, %v111
    %v113 = vsel %vm109, %v103, 0.0
    %v114 = vadd.f32 %v112, %v113
    %v115 = vsel %vm109, %v104, 0.0
    %v116 = vadd.f32 %v114, %v115
    %117 = vadd.xlane.f32.xlu0 %v116
    %v118 = vpop.xlane.xlu0 %117
    %v119 = vrot.slane %v118, 4
    %v120 = vadd.f32 %v118, %v119
    %v121 = vrot.slane %v120, 2
    %v122 = vadd.f32 %v120, %v121
    %v123 = vrot.slane %v122, 1
    %v124 = vadd.f32 %v122, %v123
    %s125 = vtos %v124
    %v126 = vstv %s125
    %127 = vst [vmem:[%s2] sm:$0xff] %v126
  $region17: #{mse_loss.1} parent=0 // pred_fallthru
    _
  // Predicated region
  $region18: #{mse_loss.1} parent=0 // pred_check
    _
  $region19: #{mse_loss.1} parent=0 // pred_check_branch
    %129 = sbr.rel (0) target = $region21
  $region20: #{mse_loss.1} parent=0 // pred_region
    _
  $region21: #{mse_loss.1} parent=0 // pred_fallthru
    _
  // Predicated region
  $region22: #{mse_loss.1} parent=0 // pred_check
    _
  $region23: #{mse_loss.1} parent=0 // pred_check_branch
    %131 = sbr.rel (0) target = $region25
  $region24: #{mse_loss.1} parent=0 // pred_region
    _
  $region25: #{mse_loss.1} parent=0 // pred_fallthru
    _

</llo_original>
